<compile_context>
chip_gen: v5e
topology: v5e:2x2
jax: 0.10.0
libtpu: 0.0.40
codegen_flags: <defaults>
</compile_context>

<pallas_src>
import math

import jax
import jax.numpy as jnp
import numpy as np
from jax.experimental import pallas as pl
from jax.experimental.pallas import tpu as pltpu


def _mean_kernel(feat_ref, len_ref, wt_ref, b_ref, out_ref, acc_ref):
    # feat_ref: [Bt, Tt, D]   len_ref: [Bt, 1] int32
    # wt_ref:   [D, D] (W.T)  b_ref:   [1, D]
    # out_ref:  [Bt, D]       acc_ref: [Bt, D] f32 scratch (time-sum accumulator)
    k = pl.program_id(1)

    @pl.when(k == 0)
    def _():
        acc_ref[...] = jnp.zeros_like(acc_ref)

    x = feat_ref[...]                                   # [Bt, Tt, D]
    bt, tt, _ = x.shape
    lens = len_ref[...]                                 # [Bt, 1] int32

    # valid[b, t] = (global_t < length[b])
    t_idx = jax.lax.broadcasted_iota(jnp.int32, (bt, tt, 1), 1) + k * tt
    valid = (t_idx < lens.reshape(bt, 1, 1)).astype(jnp.float32)   # [Bt, Tt, 1]

    # masked time-sum of tanh(x), accumulated in f32
    th = jnp.tanh(x.astype(jnp.float32))
    acc_ref[...] += jnp.sum(th * valid, axis=1)          # [Bt, D]

    # finalize: divide by length, then apply the Linear layer once per row
    @pl.when(k == pl.num_programs(1) - 1)
    def _():
        inv_len = 1.0 / lens.astype(jnp.float32)         # exact divide, [Bt, 1]
        mean = acc_ref[...] * inv_len                    # [Bt, D]
        y = jnp.dot(mean, wt_ref[...].astype(jnp.float32),
                    preferred_element_type=jnp.float32) + b_ref[...]
        out_ref[...] = y.astype(out_ref.dtype)


def mean_pool(feature, att_mask, weight, bias, *, block_b=8, block_t=512):
    """feature: [B,T,D], att_mask: [B,T,1], weight: [D,D] (out,in), bias: [D]."""
    B, T, D = feature.shape
    out_dtype = feature.dtype

    # Per-batch lengths with cheap XLA ops (replaces the [B,T,1] mask DMA).
    neg = att_mask[:, :, 0] < 0
    any_neg = jnp.any(neg, axis=1)
    first_neg = jnp.argmax(neg, axis=1).astype(jnp.int32)
    lengths = jnp.where(any_neg, first_neg + 1, jnp.int32(T))      # [B] int32

    # Tile sizes: Bt rows per step (sublane-aligned stores), Tt timesteps per
    # step chosen so double-buffered feature tiles stay within ~16 MiB of VMEM
    # (comfortable on v5e/v6e 128 MiB and v7x 64 MiB without raising limits).
    bt = block_b
    itemsize = jnp.dtype(feature.dtype).itemsize
    vmem_budget = 16 * 1024 * 1024
    tt_cap = max(8, (vmem_budget // (2 * bt * D * itemsize)) // 8 * 8)
    tt = min(block_t, tt_cap, ((T + 7) // 8) * 8)

    B_pad = math.ceil(B / bt) * bt
    T_pad = math.ceil(T / tt) * tt

    feat = feature
    if (B_pad, T_pad) != (B, T):
        feat = jnp.pad(feature, ((0, B_pad - B), (0, T_pad - T), (0, 0)))
    # Padded rows get length 1 so the divide is safe; they are sliced off below.
    lens = jnp.pad(lengths, (0, B_pad - B), constant_values=1).reshape(B_pad, 1)

    wt = weight.T.astype(jnp.float32)        # [D_in, D_out] so kernel does mean @ wt
    b2 = bias.reshape(1, D).astype(jnp.float32)

    grid = (B_pad // bt, T_pad // tt)        # (batch blocks, T reduction) — T last

    out = pl.pallas_call(
        _mean_kernel,
        out_shape=jax.ShapeDtypeStruct((B_pad, D), out_dtype),
        grid_spec=pltpu.PrefetchScalarGridSpec(
            num_scalar_prefetch=0,
            grid=grid,
            in_specs=[
                pl.BlockSpec((bt, tt, D), lambda b, k: (b, k, 0)),   # feature tile
                pl.BlockSpec((bt, 1), lambda b, k: (b, 0)),          # lengths
                pl.BlockSpec((D, D), lambda b, k: (0, 0)),           # W.T (constant)
                pl.BlockSpec((1, D), lambda b, k: (0, 0)),           # bias (constant)
            ],
            out_specs=pl.BlockSpec((bt, D), lambda b, k: (b, 0)),
            scratch_shapes=[pltpu.VMEM((bt, D), jnp.float32)],
        ),
        compiler_params=pltpu.CompilerParams(
            dimension_semantics=("parallel", "arbitrary")),
    )(feat, lens, wt, b2)
    return out[:B]


def _reference(feature, att_mask, weight, bias):
    # pure-JAX/numpy reference mirroring the PyTorch semantics
    h = jnp.tanh(feature) @ weight.T + bias          # [B, T, D]
    B, T, D = feature.shape
    outs = []
    for i in range(B):
        m = np.asarray(att_mask[i, :, 0])
        neg = np.nonzero(m < 0)[0]
        length = T if neg.size == 0 else int(neg[0]) + 1
        outs.append(jnp.mean(h[i, :length], axis=0))
    return jnp.stack(outs)


if __name__ == "__main__":
    B, T, D = 3, 24, 32
    key = jax.random.PRNGKey(0)
    k_feat, k_w, k_b = jax.random.split(key, 3)

    feature = jax.random.normal(k_feat, (B, T, D), dtype=jnp.float32)

    # att_mask: batch 0 all positive (length = T),
    #           batch 1 negative from t=5 (length = 6),
    #           batch 2 negative from t=17 (length = 18, crosses a T tile).
    att_mask = np.ones((B, T, 1), dtype=np.float32)
    att_mask[1, 5:, 0] = -1.0
    att_mask[2, 17:, 0] = -1.0
    att_mask = jnp.asarray(att_mask)

    # deterministic nn.Linear(out_dim, out_dim) parameters
    bound = 1.0 / np.sqrt(D)
    weight = jax.random.uniform(k_w, (D, D), jnp.float32, -bound, bound)
    bias = jax.random.uniform(k_b, (D,), jnp.float32, -bound, bound)

    # block_t=16 forces a 2-step T reduction with T padding (24 -> 32) to
    # exercise the accumulator path; batch is padded 3 -> 8.
    out = mean_pool(feature, att_mask, weight, bias, block_t=16)
    out = jax.block_until_ready(out)

    ref = _reference(feature, att_mask, weight, bias)
    np.testing.assert_allclose(np.asarray(out), np.asarray(ref),
                               rtol=1e-5, atol=1e-5)
    print("KERNEL_OK")
</pallas_src>

<mosaic_0001>
module attributes {stable_mosaic.version = 11 : i64} {
  func.func @_mean_kernel(%arg0: i32, %arg1: i32, %arg2: memref<8x16x32xf32, #tpu.memory_space<vmem>>, %arg3: memref<8x1xi32, #tpu.memory_space<vmem>>, %arg4: memref<32x32xf32, #tpu.memory_space<vmem>>, %arg5: memref<1x32xf32, #tpu.memory_space<vmem>>, %arg6: memref<8x32xf32, #tpu.memory_space<vmem>>, %arg7: memref<8x32xf32, #tpu.memory_space<vmem>>) attributes {dimension_semantics = [#tpu.dimension_semantics<parallel>, #tpu.dimension_semantics<arbitrary>], iteration_bounds = array<i64: 1, 2>, scalar_prefetch = 0 : i64, scratch_operands = 1 : i64, tpu.core_type = #tpu.core_type<tc>, window_params = [{transform_indices = @transform_0, window_bounds = array<i64: 8, 16, 32>}, {transform_indices = @transform_1, window_bounds = array<i64: 8, 1>}, {pipeline_mode = #tpu.pipeline_mode<synchronous>, transform_indices = @transform_2, window_bounds = array<i64: 32, 32>}, {pipeline_mode = #tpu.pipeline_mode<synchronous>, transform_indices = @transform_3, window_bounds = array<i64: 1, 32>}, {transform_indices = @transform_4, window_bounds = array<i64: 8, 32>}]} {
    %c0_i32 = arith.constant 0 : i32
    %0 = arith.cmpi eq, %arg1, %c0_i32 : i32
    %1 = arith.extui %0 : i1 to i32
    %c0_i32_0 = arith.constant 0 : i32
    %2 = arith.cmpi ne, %1, %c0_i32_0 : i32
    scf.if %2 {
      %cst_10 = arith.constant 0.000000e+00 : f32
      %24 = vector.broadcast %cst_10 : f32 to vector<8x32xf32>
      %c0_11 = arith.constant 0 : index
      %c0_12 = arith.constant 0 : index
      %25 = vector.load %arg7[%c0_11, %c0_12] : memref<8x32xf32, #tpu.memory_space<vmem>>, vector<8x32xf32>
      tpu.vector_store %arg7[%c0_11, %c0_12], %24 {strides = array<i32>} : memref<8x32xf32, #tpu.memory_space<vmem>>, vector<8x32xf32>,
    } else {
    }
    %c0 = arith.constant 0 : index
    %c0_1 = arith.constant 0 : index
    %c0_2 = arith.constant 0 : index
    %3 = vector.load %arg2[%c0, %c0_1, %c0_2] : memref<8x16x32xf32, #tpu.memory_space<vmem>>, vector<8x16x32xf32>
    %c0_3 = arith.constant 0 : index
    %c0_4 = arith.constant 0 : index
    %4 = vector.load %arg3[%c0_3, %c0_4] : memref<8x1xi32, #tpu.memory_space<vmem>>, vector<8x1xi32>
    %5 = tpu.iota {dimensions = array<i32: 1>} : vector<8x16x1xi32>
    %c16_i32 = arith.constant 16 : i32
    %6 = arith.muli %arg1, %c16_i32 : i32
    %7 = vector.broadcast %6 : i32 to vector<8x16x1xi32>
    %8 = arith.addi %5, %7 : vector<8x16x1xi32>
    %9 = vector.shape_cast %4 : vector<8x1xi32> to vector<8x1x1xi32>
    %10 = vector.broadcast %9 : vector<8x1x1xi32> to vector<8x16x1xi32>
    %11 = arith.cmpi slt, %8, %10 : vector<8x16x1xi32>
    %12 = arith.extui %11 : vector<8x16x1xi1> to vector<8x16x1xi32>
    %13 = arith.sitofp %12 : vector<8x16x1xi32> to vector<8x16x1xf32>
    %14 = math.tanh %3 : vector<8x16x32xf32>
    %c0_5 = arith.constant 0 : index
    %c0_6 = arith.constant 0 : index
    %15 = vector.load %arg7[%c0_5, %c0_6] : memref<8x32xf32, #tpu.memory_space<vmem>>, vector<8x32xf32>
    %16 = vector.broadcast %13 : vector<8x16x1xf32> to vector<8x16x32xf32>
    %17 = arith.mulf %14, %16 : vector<8x16x32xf32>
    %cst = arith.constant dense<0.000000e+00> : vector<8x32xf32>
    %18 = vector.multi_reduction <add>, %17, %cst [1] : vector<8x16x32xf32> to vector<8x32xf32>
    %19 = arith.addf %15, %18 : vector<8x32xf32>
    %c0_7 = arith.constant 0 : index
    %c0_8 = arith.constant 0 : index
    %20 = vector.load %arg7[%c0_7, %c0_8] : memref<8x32xf32, #tpu.memory_space<vmem>>, vector<8x32xf32>
    tpu.vector_store %arg7[%c0_7, %c0_8], %19 {strides = array<i32>} : memref<8x32xf32, #tpu.memory_space<vmem>>, vector<8x32xf32>,
    %c1_i32 = arith.constant 1 : i32
    %21 = arith.cmpi eq, %arg1, %c1_i32 : i32
    %22 = arith.extui %21 : i1 to i32
    %c0_i32_9 = arith.constant 0 : i32
    %23 = arith.cmpi ne, %22, %c0_i32_9 : i32
    scf.if %23 {
      %24 = arith.sitofp %4 : vector<8x1xi32> to vector<8x1xf32>
      %cst_10 = arith.constant 1.000000e+00 : f32
      %25 = vector.broadcast %cst_10 : f32 to vector<8x1xf32>
      %26 = arith.divf %25, %24 : vector<8x1xf32>
      %c0_11 = arith.constant 0 : index
      %c0_12 = arith.constant 0 : index
      %27 = vector.load %arg7[%c0_11, %c0_12] : memref<8x32xf32, #tpu.memory_space<vmem>>, vector<8x32xf32>
      %28 = vector.broadcast %26 : vector<8x1xf32> to vector<8x32xf32>
      %29 = arith.mulf %27, %28 : vector<8x32xf32>
      %c0_13 = arith.constant 0 : index
      %c0_14 = arith.constant 0 : index
      %30 = vector.load %arg4[%c0_13, %c0_14] : memref<32x32xf32, #tpu.memory_space<vmem>>, vector<32x32xf32>
      %cst_15 = arith.constant dense<0.000000e+00> : vector<8x32xf32>
      %31 = tpu.matmul %29, %30, %cst_15 {dimension_numbers = #tpu.dot_dimension_numbers<[1], [0], [0], [1], [0, 0, 1, 1], [], []>} : vector<8x32xf32>, vector<32x32xf32>, vector<8x32xf32> -> vector<8x32xf32>
      %c0_16 = arith.constant 0 : index
      %c0_17 = arith.constant 0 : index
      %32 = vector.load %arg5[%c0_16, %c0_17] : memref<1x32xf32, #tpu.memory_space<vmem>>, vector<1x32xf32>
      %33 = vector.broadcast %32 : vector<1x32xf32> to vector<8x32xf32>
      %34 = arith.addf %31, %33 : vector<8x32xf32>
      %c0_18 = arith.constant 0 : index
      %c0_19 = arith.constant 0 : index
      %35 = vector.load %arg6[%c0_18, %c0_19] : memref<8x32xf32, #tpu.memory_space<vmem>>, vector<8x32xf32>
      tpu.vector_store %arg6[%c0_18, %c0_19], %34 {strides = array<i32>} : memref<8x32xf32, #tpu.memory_space<vmem>>, vector<8x32xf32>,
    } else {
    }
    return
  }
  func.func @transform_0(%arg0: i32, %arg1: i32) -> (i32, i32, i32) {
    %c0_i32 = arith.constant 0 : i32
    %c0_i32_0 = arith.constant 0 : i32
    return %arg0, %arg1, %c0_i32 : i32, i32, i32
  }
  func.func @transform_1(%arg0: i32, %arg1: i32) -> (i32, i32) {
    %c0_i32 = arith.constant 0 : i32
    %c0_i32_0 = arith.constant 0 : i32
    return %arg0, %c0_i32 : i32, i32
  }
  func.func @transform_2(%arg0: i32, %arg1: i32) -> (i32, i32) {
    %c0_i32 = arith.constant 0 : i32
    %c0_i32_0 = arith.constant 0 : i32
    %c0_i32_1 = arith.constant 0 : i32
    return %c0_i32, %c0_i32_0 : i32, i32
  }
  func.func @transform_3(%arg0: i32, %arg1: i32) -> (i32, i32) {
    %c0_i32 = arith.constant 0 : i32
    %c0_i32_0 = arith.constant 0 : i32
    %c0_i32_1 = arith.constant 0 : i32
    return %c0_i32, %c0_i32_0 : i32, i32
  }
  func.func @transform_4(%arg0: i32, %arg1: i32) -> (i32, i32) {
    %c0_i32 = arith.constant 0 : i32
    %c0_i32_0 = arith.constant 0 : i32
    return %arg0, %c0_i32 : i32, i32
  }
}

</mosaic_0001>

<llo_original>
// kernel: tpu_custom_call.1
$region0: #{tpu_custom_call.1}
  #allocation0 [shape = 'u32[]', space=smem, size = 0x4, offset = 0x4, fixed_abs, tag = 'smem constant byte address 0x4 - core index']
  #allocation1 [shape = 'u32[72,128]{1,0:T(1,128)}', space=vmem, size = 0x9000, scoped, tag = 'internal scratch']
  #allocation2 [shape = 'f32[8,32]{1,0:T(8,128)}', space=vmem, size = 0x1000, scoped, tag = 'scratch operand']
  #allocation9 [shape = 's32[]', space=sflag, size = 0x4, offset = 0, fixed_abs, tag = 'sflag constant byte address 0x0 - dummy sync flag']
  %s0 = inlined_call_operand.hbm [shape: f32[8,32,32], index: 0, kind: input, shape index: {}]
  %s1 = inlined_call_operand.vmem [shape: s32[8,1], index: 1, kind: input, shape index: {}]
  %s2 = inlined_call_operand.hbm [shape: f32[32,32], index: 2, kind: input, shape index: {}]
  %s3 = inlined_call_operand.vmem [shape: f32[1,32], index: 3, kind: input, shape index: {}]
  %s4 = inlined_call_operand.hbm [shape: f32[8,32], index: 4, kind: output, shape index: {}]
  %s5 = sld [smem:[#allocation0]]
  $region65: #{tpu_custom_call.1} parent=0
    _
  %s7 = ssub.s32 1, %s5
  %s8 = scalar_select 0, %s7, %s5
  $region1: #{tpu_custom_call.1} parent=0
    #allocation3 [shape = 'u8[131072]{0}', space=vmem, size = 0x20000, scoped, tag = 'input window, operand 0']
    #allocation4 [shape = 's32[2]{0}', space=sflag, size = 0x8, scoped, tag = 'scoped memory for tpu_custom_call.1']
    #allocation5 [shape = 's32[2]{0}', space=sflag, size = 0x8, scoped, tag = 'scoped memory for tpu_custom_call.1']
    #allocation6 [shape = 'u8[16384]{0}', space=vmem, size = 0x4000, scoped, tag = 'input window, operand 2, single buffered']
    #allocation7 [shape = 's32[1]{0}', space=sflag, size = 0x4, scoped, tag = 'scoped memory for tpu_custom_call.1']
    #allocation8 [shape = 'u8[4096]{0}', space=vmem, size = 0x1000, scoped, tag = 'output window, operand 0, single buffered']
    %9 = vsyncpa [#allocation4], 0
    %s10 = scalar_lea.sflag [#allocation4], 1
    %11 = vsyncpa %s10, 0
    %12 = vsyncpa [#allocation7], 0
    %13 = vsyncpa [#allocation5], 0
    loop: start=0, step=1, limit=4
    $region2: #{tpu_custom_call.1} parent=1 // loop_pre_header
      _
    $region3: #{tpu_custom_call.1} parent=1 // loop_header
      %s15 = sphi 0, %s19
      %p16 = scmp.ge.s32.totalorder %s15, 4
      %s22 = sphi 0, %s34
      %s23 = sphi 0, %s30
      %s24 = sphi 0, %s22
      %s25 = sphi 0, %s23
      %s26 = sphi 0, %s24
      %s27 = sphi 0, %s25
      %s39 = sphi 0, %s41
      %s42 = sphi 0, %s39
      %s43 = sphi 0, %s42
      %s59 = sphi 0, %s43
      %s65 = sphi 0, %s67
      %s68 = sphi 0, %s65
      %s69 = sphi 0, %s68
      %s85 = sphi 0, %s69
      %s89 = sphi 0, %s89
      %s91 = sphi 0, %s89
      %s92 = sphi 0, %s91
      %s106 = sphi 0, %s92
      %s110 = sphi 0, %s110
      %s112 = sphi 0, %s110
      %s113 = sphi 0, %s112
      %s127 = sphi 0, %s113
      %s133 = sphi 0, %s135
      %s136 = sphi 0, %s133
      %s137 = sphi 0, %s136
      %s153 = sphi 0, %s137
    $region4: #{tpu_custom_call.1} parent=1 // loop_header_branch
      %18 = sbr.rel (%p16) target = $region8
    $region5: #{tpu_custom_call.1} parent=1 // loop_body
      %s20 = ssub.s32 %s15, 1
      %s21 = ssub.s32 %s15, 2
      %s28 = sadd.s32 1, %s23
      %p29 = scmp.ge.s32.totalorder %s28, 2
      %s30 = scalar_select %p29, 0, %s28
      %s31 = sadd.s32 1, %s22
      %s32 = scalar_select %p29, %s31, %s22
      %p33 = scmp.ge.s32.totalorder %s32, 1
      %s34 = scalar_select %p33, 0, %s32
      %s35 = ssub.s32 %s22, %s34
      %s36 = ssub.s32 %s23, %s30
      %s37 = sor.u32 %s35, %s36
      %p38 = scmp.eq.s32.totalorder %s37, 0
      %s40 = sadd.s32 %s39, 1
      %s41 = scalar_select %p38, %s39, %s40
      %p44 = pneg %p38
      %p45 = scmp.eq.s32.totalorder %s15, 1
      %p46 = por %p44, %p45
      %p47 = scmp.ne.s32.totalorder %s39, %s42
      %p48 = scmp.eq.s32.totalorder %s15, 0
      %p49 = por %p47, %p48
      %p50 = scmp.ne.s32.totalorder %s39, %s42
      %p51 = scmp.eq.s32.totalorder %s20, 1
      %p52 = por %p50, %p51
      %p53 = scmp.ne.s32.totalorder %s42, %s43
      %p54 = scmp.eq.s32.totalorder %s20, 0
      %p55 = por %p53, %p54
      %p56 = scmp.ne.s32.totalorder %s42, %s43
      %p57 = scmp.eq.s32.totalorder %s21, 1
      %p58 = por %p56, %p57
      %p60 = scmp.ne.s32.totalorder %s43, %s59
      %p61 = scmp.eq.s32.totalorder %s21, 0
      %p62 = por %p60, %p61
      %s63 = ssub.s32 %s22, %s34
      %p64 = scmp.eq.s32.totalorder %s63, 0
      %s66 = sadd.s32 %s65, 1
      %s67 = scalar_select %p64, %s65, %s66
      %p70 = pneg %p64
      %p71 = scmp.eq.s32.totalorder %s15, 1
      %p72 = por %p70, %p71
      %p73 = scmp.ne.s32.totalorder %s65, %s68
      %p74 = scmp.eq.s32.totalorder %s15, 0
      %p75 = por %p73, %p74
      %p76 = scmp.ne.s32.totalorder %s65, %s68
      %p77 = scmp.eq.s32.totalorder %s20, 1
      %p78 = por %p76, %p77
      %p79 = scmp.ne.s32.totalorder %s68, %s69
      %p80 = scmp.eq.s32.totalorder %s20, 0
      %p81 = por %p79, %p80
      %p82 = scmp.ne.s32.totalorder %s68, %s69
      %p83 = scmp.eq.s32.totalorder %s21, 1
      %p84 = por %p82, %p83
      %p86 = scmp.ne.s32.totalorder %s69, %s85
      %p87 = scmp.eq.s32.totalorder %s21, 0
      %p88 = por %p86, %p87
      %s90 = sadd.s32 %s89, 1
      %p93 = scmp.eq.s32.totalorder %s15, 1
      %p94 = scmp.ne.s32.totalorder %s89, %s91
      %p95 = scmp.eq.s32.totalorder %s15, 0
      %p96 = por %p94, %p95
      %p97 = scmp.ne.s32.totalorder %s89, %s91
      %p98 = scmp.eq.s32.totalorder %s20, 1
      %p99 = por %p97, %p98
      %p100 = scmp.ne.s32.totalorder %s91, %s92
      %p101 = scmp.eq.s32.totalorder %s20, 0
      %p102 = por %p100, %p101
      %p103 = scmp.ne.s32.totalorder %s91, %s92
      %p104 = scmp.eq.s32.totalorder %s21, 1
      %p105 = por %p103, %p104
      %p107 = scmp.ne.s32.totalorder %s92, %s106
      %p108 = scmp.eq.s32.totalorder %s21, 0
      %p109 = por %p107, %p108
      %s111 = sadd.s32 %s110, 1
      %p114 = scmp.eq.s32.totalorder %s15, 1
      %p115 = scmp.ne.s32.totalorder %s110, %s112
      %p116 = scmp.eq.s32.totalorder %s15, 0
      %p117 = por %p115, %p116
      %p118 = scmp.ne.s32.totalorder %s110, %s112
      %p119 = scmp.eq.s32.totalorder %s20, 1
      %p120 = por %p118, %p119
      %p121 = scmp.ne.s32.totalorder %s112, %s113
      %p122 = scmp.eq.s32.totalorder %s20, 0
      %p123 = por %p121, %p122
      %p124 = scmp.ne.s32.totalorder %s112, %s113
      %p125 = scmp.eq.s32.totalorder %s21, 1
      %p126 = por %p124, %p125
      %p128 = scmp.ne.s32.totalorder %s113, %s127
      %p129 = scmp.eq.s32.totalorder %s21, 0
      %p130 = por %p128, %p129
      %s131 = ssub.s32 %s22, %s34
      %p132 = scmp.eq.s32.totalorder %s131, 0
      %s134 = sadd.s32 %s133, 1
      %s135 = scalar_select %p132, %s133, %s134
      %p138 = pneg %p132
      %p139 = scmp.eq.s32.totalorder %s15, 1
      %p140 = por %p138, %p139
      %p141 = scmp.ne.s32.totalorder %s133, %s136
      %p142 = scmp.eq.s32.totalorder %s15, 0
      %p143 = por %p141, %p142
      %p144 = scmp.ne.s32.totalorder %s133, %s136
      %p145 = scmp.eq.s32.totalorder %s20, 1
      %p146 = por %p144, %p145
      %p147 = scmp.ne.s32.totalorder %s136, %s137
      %p148 = scmp.eq.s32.totalorder %s20, 0
      %p149 = por %p147, %p148
      %p150 = scmp.ne.s32.totalorder %s136, %s137
      %p151 = scmp.eq.s32.totalorder %s21, 1
      %p152 = por %p150, %p151
      %p154 = scmp.ne.s32.totalorder %s137, %s153
      %p155 = scmp.eq.s32.totalorder %s21, 0
      %p156 = por %p154, %p155
      %p157 = scmp.le.s32.totalorder 1, %s15
      %p158 = scmp.lt.s32.totalorder %s15, 3
      %p159 = pnand %p157, %p158
      %p160 = pneg %p159
      // Predicated region
      $region9: #{tpu_custom_call.1} parent=5 // pred_check
        _
      $region10: #{tpu_custom_call.1} parent=5 // pred_check_branch
        %162 = sbr.rel (%p159) target = $region12
      $region11: #{tpu_custom_call.1} parent=5 // pred_region
        %s163 = ssub.s32 %s15, 1
        // Predicated region
        $region13: #{tpu_custom_call.1} parent=11 // pred_check
          %p164 = pneg %p81
        $region14: #{tpu_custom_call.1} parent=11 // pred_check_branch
          %166 = sbr.rel (%p164) target = $region16
        $region15: #{tpu_custom_call.1} parent=11 // pred_region
          %p167 = scmp.lt.s32.totalorder %s24, 0
          %s168 = scalar_select %p167, %s24, 0
          %s169 = smul.addr %s168, 8
          %s170 = scalar_lea.vmem %s1, %s169
        $region16: #{tpu_custom_call.1} parent=11 // pred_fallthru
          _
        // Predicated region
        $region17: #{tpu_custom_call.1} parent=11 // pred_check
          %p171 = pneg %p102
        $region18: #{tpu_custom_call.1} parent=11 // pred_check_branch
          %173 = sbr.rel (%p171) target = $region20
        $region19: #{tpu_custom_call.1} parent=11 // pred_region
          %175 = vsyncadd [#allocation7], 0
          %s176 = sshll.u32 %s2, 4
          %s177 = int_to_ptr.hbm [resolvable:$true] %s176
          %s178 = sshll.u32 [#allocation6], 4
          %s179 = int_to_ptr.vmem [resolvable:$true] %s178
          %184 = dma.hbm_to_vmem [thread:$0]  %s177, 512, %s179, [#allocation7], 128, 128, 8
        $region20: #{tpu_custom_call.1} parent=11 // pred_fallthru
          _
        // Predicated region
        $region21: #{tpu_custom_call.1} parent=11 // pred_check
          %p185 = pneg %p123
        $region22: #{tpu_custom_call.1} parent=11 // pred_check_branch
          %187 = sbr.rel (%p185) target = $region24
        $region23: #{tpu_custom_call.1} parent=11 // pred_region
          _
        $region24: #{tpu_custom_call.1} parent=11 // pred_fallthru
          _
      $region12: #{tpu_custom_call.1} parent=5 // pred_fallthru
        _
      %p188 = scmp.lt.s32.totalorder %s15, 2
      // Predicated region
      $region25: #{tpu_custom_call.1} parent=5 // pred_check
        %p189 = pneg %p188
      $region26: #{tpu_custom_call.1} parent=5 // pred_check_branch
        %191 = sbr.rel (%p189) target = $region28
      $region27: #{tpu_custom_call.1} parent=5 // pred_region
        // Predicated region
        $region29: #{tpu_custom_call.1} parent=27 // pred_check
          %p192 = pneg %p49
        $region30: #{tpu_custom_call.1} parent=27 // pred_check_branch
          %194 = sbr.rel (%p192) target = $region32
        $region31: #{tpu_custom_call.1} parent=27 // pred_region
          #allocation10 [shape = 'u32[6]{0}', space=smem, size = 0x18, scoped, tag = 'DMA stride descriptor']
          %s195 = sand.u32 %s39, 1
          %s196 = scalar_lea.sflag [#allocation4], %s195
          %s197 = sand.u32 %s39, 1
          %s198 = smul.addr %s197, 128
          %s199 = scalar_lea.vmem [#allocation3], %s198
          %s200 = smul.u32 8, %s22
          %s201 = smul.u32 2, %s23
          %203 = vsyncadd %s196, 0
          %s204 = smul.addr %s200, 4
          %s205 = sadd.s32 %s201, %s204
          %s206 = smul.addr %s205, 8
          %s207 = scalar_lea.hbm %s0, %s206
          %s209 = sshll.u32 1, 14
          %s210 = sxor.u32 4294967295, %s209
          %s212 = sld [smem:[#allocation0]]
          %s213 = sadd.s32 2, %s212
          %s215 = sshll.u32 7, 26
          %s216 = sxor.u32 4294967295, %s215
          %s217 = sand.u32 0, %s216
          %s218 = sshll.u32 %s213, 26
          %s219 = sor.u32 %s217, %s218
          %s220 = sshll.u32 %s207, 4
          %s221 = int_to_ptr.hbm [resolvable:$true] %s220
          %s222 = sshll.u32 %s199, 4
          %s223 = int_to_ptr.vmem [resolvable:$true] %s222
          %229 = sst [smem:[#allocation10]] 512
          %s230 = scalar_lea.smem [#allocation10], 1
          %231 = sst [smem:[%s230]] 256
          %s232 = scalar_lea.smem [#allocation10], 2
          %233 = sst [smem:[%s232]] 2
          %s234 = scalar_lea.smem [#allocation10], 3
          %235 = sst [smem:[%s234]] 128
          %s236 = scalar_lea.smem [#allocation10], 4
          %237 = sst [smem:[%s236]] 128
          %s238 = scalar_lea.smem [#allocation10], 5
          %239 = sst [smem:[%s238]] 8
          %241 = dma.general %s221, 2048, %s223, %s196, [#allocation9], [#allocation10], %s219, 0
        $region32: #{tpu_custom_call.1} parent=27 // pred_fallthru
          _
      $region28: #{tpu_custom_call.1} parent=5 // pred_fallthru
        _
      %p242 = scmp.le.s32.totalorder 1, %s15
      %p243 = scmp.lt.s32.totalorder %s15, 3
      %p244 = pnand %p242, %p243
      %p245 = pneg %p244
      // Predicated region
      $region33: #{tpu_custom_call.1} parent=5 // pred_check
        _
      $region34: #{tpu_custom_call.1} parent=5 // pred_check_branch
        %247 = sbr.rel (%p244) target = $region36
      $region35: #{tpu_custom_call.1} parent=5 // pred_region
        %s248 = ssub.s32 %s15, 1
        %s249 = sand.u32 %s42, 1
        %s250 = scalar_lea.sflag [#allocation4], %s249
        %s251 = sand.u32 %s42, 1
        %s252 = smul.addr %s251, 128
        %s253 = scalar_lea.vmem [#allocation3], %s252
        // Predicated region
        $region37: #{tpu_custom_call.1} parent=35 // pred_check
          %p254 = pneg %p55
        $region38: #{tpu_custom_call.1} parent=35 // pred_check_branch
          %256 = sbr.rel (%p254) target = $region40
        $region39: #{tpu_custom_call.1} parent=35 // pred_region
          %258 = dma.done %s250, 2048
        $region40: #{tpu_custom_call.1} parent=35 // pred_fallthru
          _
        // Predicated region
        $region41: #{tpu_custom_call.1} parent=35 // pred_check
          %p259 = pneg %p102
        $region42: #{tpu_custom_call.1} parent=35 // pred_check_branch
          %261 = sbr.rel (%p259) target = $region44
        $region43: #{tpu_custom_call.1} parent=35 // pred_region
          %263 = dma.done [#allocation7], 512
        $region44: #{tpu_custom_call.1} parent=35 // pred_fallthru
          _
        %s264 = sand.u32 %s42, 1
        %s265 = scalar_lea.sflag [#allocation4], %s264
        %s266 = sand.u32 %s42, 1
        %s267 = smul.addr %s266, 128
        %s268 = scalar_lea.vmem [#allocation3], %s267
        %p269 = pneg %p55
        %p270 = pneg %p52
        %p271 = scmp.lt.s32.totalorder %s24, 0
        %s272 = scalar_select %p271, %s24, 0
        %s273 = smul.addr %s272, 8
        %s274 = scalar_lea.vmem %s1, %s273
        %p275 = pneg %p81
        %p276 = pneg %p78
        %p277 = pneg %p102
        %p278 = pneg %p99
        %p279 = pneg %p123
        %p280 = pneg %p120
        %p281 = pneg %p149
        %p282 = pneg %p146
        %s283 = smul.u32 8, %s24
        %s284 = smul.u32 2, %s25
        %p285 = scmp.lt.s32.totalorder %s24, 0
        %s286 = scalar_select %p285, %s24, 0
        %s287 = smul.addr %s286, 8
        %s288 = scalar_lea.vmem %s1, %s287
        %p289 = scmp.eq.s32.totalorder %s25, 0
        // Predicated region
        $region45: #{tpu_custom_call.1} parent=35 // pred_check
          %p290 = pneg %p289
        $region46: #{tpu_custom_call.1} parent=35 // pred_check_branch
          %292 = sbr.rel (%p290) target = $region48
        $region47: #{tpu_custom_call.1} parent=35 // pred_region
          %vm293 = vcmask 261120
          %294 = vst.msk [vmem:[#allocation2] sm:$0xff] %vm293, 0.0
        $region48: #{tpu_custom_call.1} parent=35 // pred_fallthru
          _
        %v295 = vld [vmem:[%s253] sm:$0xff]
        %v296 = vld [vmem:[%s253 + $0x8] sm:$0xff]
        %v297 = vld [vmem:[%s253 + $0x10] sm:$0xff]
        %v298 = vld [vmem:[%s253 + $0x18] sm:$0xff]
        %v299 = vld [vmem:[%s253 + $0x20] sm:$0xff]
        %v300 = vld [vmem:[%s253 + $0x28] sm:$0xff]
        %v301 = vld [vmem:[%s253 + $0x30] sm:$0xff]
        %v302 = vld [vmem:[%s253 + $0x38] sm:$0xff]
        %v303 = vld [vmem:[%s253 + $0x40] sm:$0xff]
        %v304 = vld [vmem:[%s253 + $0x48] sm:$0xff]
        %v305 = vld [vmem:[%s253 + $0x50] sm:$0xff]
        %v306 = vld [vmem:[%s253 + $0x58] sm:$0xff]
        %v307 = vld [vmem:[%s253 + $0x60] sm:$0xff]
        %v308 = vld [vmem:[%s253 + $0x68] sm:$0xff]
        %v309 = vld [vmem:[%s253 + $0x70] sm:$0xff]
        %v310 = vld [vmem:[%s253 + $0x78] sm:$0xff]
        %v311 = vld [vmem:[%s288] sm:$0xff]
        %v312 = vlaneseq
        %v313 = vshrl.u32 %v312, 7
        %v314 = vadd.s32 %v313, 8
        %s315 = smul.u32 %s25, 16
        %v316 = vstv %s315
        %v317 = vadd.s32 %v313, %v316
        %v318 = vadd.s32 %v314, %v316
        %v319 = vrot.slane %v311, 1
        %v320 = vrot.slane %v311, 2
        %v321 = vrot.slane %v311, 3
        %v322 = vrot.slane %v311, 4
        %v323 = vrot.slane %v311, 5
        %v324 = vrot.slane %v311, 6
        %v325 = vrot.slane %v311, 7
        %v326 = vperm.slane %v311, 0
        %v327 = vperm.slane %v319, 0
        %v328 = vperm.slane %v320, 0
        %v329 = vperm.slane %v321, 0
        %v330 = vperm.slane %v322, 0
        %v331 = vperm.slane %v323, 0
        %v332 = vperm.slane %v324, 0
        %v333 = vperm.slane %v325, 0
        %vm334 = vcmp.lt.s32.totalorder %v317, %v326
        %vm335 = vcmp.lt.s32.totalorder %v318, %v326
        %vm336 = vcmp.lt.s32.totalorder %v317, %v327
        %vm337 = vcmp.lt.s32.totalorder %v318, %v327
        %vm338 = vcmp.lt.s32.totalorder %v317, %v328
        %vm339 = vcmp.lt.s32.totalorder %v318, %v328
        %vm340 = vcmp.lt.s32.totalorder %v317, %v329
        %vm341 = vcmp.lt.s32.totalorder %v318, %v329
        %vm342 = vcmp.lt.s32.totalorder %v317, %v330
        %vm343 = vcmp.lt.s32.totalorder %v318, %v330
        %vm344 = vcmp.lt.s32.totalorder %v317, %v331
        %vm345 = vcmp.lt.s32.totalorder %v318, %v331
        %vm346 = vcmp.lt.s32.totalorder %v317, %v332
        %vm347 = vcmp.lt.s32.totalorder %v318, %v332
        %vm348 = vcmp.lt.s32.totalorder %v317, %v333
        %vm349 = vcmp.lt.s32.totalorder %v318, %v333
        %v350 = vsel %vm334, 1, 0
        %v351 = vsel %vm335, 1, 0
        %v352 = vsel %vm336, 1, 0
        %v353 = vsel %vm337, 1, 0
        %v354 = vsel %vm338, 1, 0
        %v355 = vsel %vm339, 1, 0
        %v356 = vsel %vm340, 1, 0
        %v357 = vsel %vm341, 1, 0
        %v358 = vsel %vm342, 1, 0
        %v359 = vsel %vm343, 1, 0
        %v360 = vsel %vm344, 1, 0
        %v361 = vsel %vm345, 1, 0
        %v362 = vsel %vm346, 1, 0
        %v363 = vsel %vm347, 1, 0
        %v364 = vsel %vm348, 1, 0
        %v365 = vsel %vm349, 1, 0
        %v366 = vcvt.s32.f32 %v350
        %v367 = vcvt.s32.f32 %v351
        %v368 = vcvt.s32.f32 %v352
        %v369 = vcvt.s32.f32 %v353
        %v370 = vcvt.s32.f32 %v354
        %v371 = vcvt.s32.f32 %v355
        %v372 = vcvt.s32.f32 %v356
        %v373 = vcvt.s32.f32 %v357
        %v374 = vcvt.s32.f32 %v358
        %v375 = vcvt.s32.f32 %v359
        %v376 = vcvt.s32.f32 %v360
        %v377 = vcvt.s32.f32 %v361
        %v378 = vcvt.s32.f32 %v362
        %v379 = vcvt.s32.f32 %v363
        %v380 = vcvt.s32.f32 %v364
        %v381 = vcvt.s32.f32 %v365
        %v382 = vtanh.pop %v295
        %v383 = vtanh.pop %v296
        %v384 = vtanh.pop %v297
        %v385 = vtanh.pop %v298
        %v386 = vtanh.pop %v299
        %v387 = vtanh.pop %v300
        %v388 = vtanh.pop %v301
        %v389 = vtanh.pop %v302
        %v390 = vtanh.pop %v303
        %v391 = vtanh.pop %v304
        %v392 = vtanh.pop %v305
        %v393 = vtanh.pop %v306
        %v394 = vtanh.pop %v307
        %v395 = vtanh.pop %v308
        %v396 = vtanh.pop %v309
        %v397 = vtanh.pop %v310
        %v398 = vld [vmem:[#allocation2] sm:$0xff]
        %400 = vset.pattern.permute.xlu0 0
        %401 = vperm.xlu0 %400, %v366
        %v402 = vpop.permute.xlu0 %401
        %405 = vset.pattern.permute.xlu0 0
        %406 = vperm.xlu0 %405, %v367
        %v407 = vpop.permute.xlu0 %406
        %410 = vset.pattern.permute.xlu0 0
        %411 = vperm.xlu0 %410, %v368
        %v412 = vpop.permute.xlu0 %411
        %415 = vset.pattern.permute.xlu0 0
        %416 = vperm.xlu0 %415, %v369
        %v417 = vpop.permute.xlu0 %416
        %420 = vset.pattern.permute.xlu0 0
        %421 = vperm.xlu0 %420, %v370
        %v422 = vpop.permute.xlu0 %421
        %425 = vset.pattern.permute.xlu0 0
        %426 = vperm.xlu0 %425, %v371
        %v427 = vpop.permute.xlu0 %426
        %430 = vset.pattern.permute.xlu0 0
        %431 = vperm.xlu0 %430, %v372
        %v432 = vpop.permute.xlu0 %431
        %435 = vset.pattern.permute.xlu0 0
        %436 = vperm.xlu0 %435, %v373
        %v437 = vpop.permute.xlu0 %436
        %440 = vset.pattern.permute.xlu0 0
        %441 = vperm.xlu0 %440, %v374
        %v442 = vpop.permute.xlu0 %441
        %445 = vset.pattern.permute.xlu0 0
        %446 = vperm.xlu0 %445, %v375
        %v447 = vpop.permute.xlu0 %446
        %450 = vset.pattern.permute.xlu0 0
        %451 = vperm.xlu0 %450, %v376
        %v452 = vpop.permute.xlu0 %451
        %455 = vset.pattern.permute.xlu0 0
        %456 = vperm.xlu0 %455, %v377
        %v457 = vpop.permute.xlu0 %456
        %460 = vset.pattern.permute.xlu0 0
        %461 = vperm.xlu0 %460, %v378
        %v462 = vpop.permute.xlu0 %461
        %465 = vset.pattern.permute.xlu0 0
        %466 = vperm.xlu0 %465, %v379
        %v467 = vpop.permute.xlu0 %466
        %470 = vset.pattern.permute.xlu0 0
        %471 = vperm.xlu0 %470, %v380
        %v472 = vpop.permute.xlu0 %471
        %475 = vset.pattern.permute.xlu0 0
        %476 = vperm.xlu0 %475, %v381
        %v477 = vpop.permute.xlu0 %476
        %v479 = vmul.f32 %v382, %v402
        %v480 = vmul.f32 %v383, %v407
        %v481 = vmul.f32 %v384, %v412
        %v482 = vmul.f32 %v385, %v417
        %v483 = vmul.f32 %v386, %v422
        %v484 = vmul.f32 %v387, %v427
        %v485 = vmul.f32 %v388, %v432
        %v486 = vmul.f32 %v389, %v437
        %v487 = vmul.f32 %v390, %v442
        %v488 = vmul.f32 %v391, %v447
        %v489 = vmul.f32 %v392, %v452
        %v490 = vmul.f32 %v393, %v457
        %v491 = vmul.f32 %v394, %v462
        %v492 = vmul.f32 %v395, %v467
        %v493 = vmul.f32 %v396, %v472
        %v494 = vmul.f32 %v397, %v477
        %vm495 = vcmask 261120
        %v496 = vsel %vm495, %v479, 0.0
        %v497 = vsel %vm495, %v480, 0.0
        %v498 = vadd.f32 %v496, %v497
        %v499 = vrot.slane %v498, 4
        %v500 = vadd.f32 %v498, %v499
        %v501 = vrot.slane %v500, 2
        %v502 = vadd.f32 %v500, %v501
        %v503 = vrot.slane %v502, 1
        %v504 = vadd.f32 %v502, %v503
        %v505 = vsel %vm495, %v481, 0.0
        %v506 = vsel %vm495, %v482, 0.0
        %v507 = vadd.f32 %v505, %v506
        %v508 = vrot.slane %v507, 4
        %v509 = vadd.f32 %v507, %v508
        %v510 = vrot.slane %v509, 2
        %v511 = vadd.f32 %v509, %v510
        %v512 = vrot.slane %v511, 1
        %v513 = vadd.f32 %v511, %v512
        %v514 = vsel %vm495, %v483, 0.0
        %v515 = vsel %vm495, %v484, 0.0
        %v516 = vadd.f32 %v514, %v515
        %v517 = vrot.slane %v516, 4
        %v518 = vadd.f32 %v516, %v517
        %v519 = vrot.slane %v518, 2
        %v520 = vadd.f32 %v518, %v519
        %v521 = vrot.slane %v520, 1
        %v522 = vadd.f32 %v520, %v521
        %v523 = vsel %vm495, %v485, 0.0
        %v524 = vsel %vm495, %v486, 0.0
        %v525 = vadd.f32 %v523, %v524
        %v526 = vrot.slane %v525, 4
        %v527 = vadd.f32 %v525, %v526
        %v528 = vrot.slane %v527, 2
        %v529 = vadd.f32 %v527, %v528
        %v530 = vrot.slane %v529, 1
        %v531 = vadd.f32 %v529, %v530
        %v532 = vsel %vm495, %v487, 0.0
        %v533 = vsel %vm495, %v488, 0.0
        %v534 = vadd.f32 %v532, %v533
        %v535 = vrot.slane %v534, 4
        %v536 = vadd.f32 %v534, %v535
        %v537 = vrot.slane %v536, 2
        %v538 = vadd.f32 %v536, %v537
        %v539 = vrot.slane %v538, 1
        %v540 = vadd.f32 %v538, %v539
        %v541 = vsel %vm495, %v489, 0.0
        %v542 = vsel %vm495, %v490, 0.0
        %v543 = vadd.f32 %v541, %v542
        %v544 = vrot.slane %v543, 4
        %v545 = vadd.f32 %v543, %v544
        %v546 = vrot.slane %v545, 2
        %v547 = vadd.f32 %v545, %v546
        %v548 = vrot.slane %v547, 1
        %v549 = vadd.f32 %v547, %v548
        %v550 = vsel %vm495, %v491, 0.0
        %v551 = vsel %vm495, %v492, 0.0
        %v552 = vadd.f32 %v550, %v551
        %v553 = vrot.slane %v552, 4
        %v554 = vadd.f32 %v552, %v553
        %v555 = vrot.slane %v554, 2
        %v556 = vadd.f32 %v554, %v555
        %v557 = vrot.slane %v556, 1
        %v558 = vadd.f32 %v556, %v557
        %v559 = vsel %vm495, %v493, 0.0
        %v560 = vsel %vm495, %v494, 0.0
        %v561 = vadd.f32 %v559, %v560
        %v562 = vrot.slane %v561, 4
        %v563 = vadd.f32 %v561, %v562
        %v564 = vrot.slane %v563, 2
        %v565 = vadd.f32 %v563, %v564
        %v566 = vrot.slane %v565, 1
        %v567 = vadd.f32 %v565, %v566
        %vm576 = vcmask 1041409
        %v577 = vsel %vm576, %v513, %v504
        %vm578 = vcmask 1042434
        %v579 = vsel %vm578, %v522, %v577
        %vm580 = vcmask 1043459
        %v581 = vsel %vm580, %v531, %v579
        %vm582 = vcmask 1044484
        %v583 = vsel %vm582, %v540, %v581
        %vm584 = vcmask 1045509
        %v585 = vsel %vm584, %v549, %v583
        %vm586 = vcmask 1046534
        %v587 = vsel %vm586, %v558, %v585
        %vm588 = vcmask 1047559
        %v589 = vsel %vm588, %v567, %v587
        %v591 = vadd.f32 %v398, %v589
        %592 = vst.msk [vmem:[#allocation2] sm:$0xff] %vm495, %v591
        %p593 = scmp.eq.s32.totalorder %s25, 1
        // Predicated region
        $region49: #{tpu_custom_call.1} parent=35 // pred_check
          %p594 = pneg %p593
        $region50: #{tpu_custom_call.1} parent=35 // pred_check_branch
          %596 = sbr.rel (%p594) target = $region52
        $region51: #{tpu_custom_call.1} parent=35 // pred_region
          %v597 = vcvt.s32.f32 %v311
          %v598 = vrcp.pop %v597
          %v599 = vmul.f32 %v597, %v598
          %v600 = vsub.f32 1.0, %v599
          %v601 = vmul.f32 %v598, %v600
          %v602 = vadd.f32 %v598, %v601
          %vm603 = vweird.f32 %v597
          %vm604 = vweird.f32 %v598
          %vm605 = vmor %vm603, %vm604
          %v606 = vsel %vm605, %v598, %v602
          %v607 = vand.u32 2147483647, %v597
          %vm608 = vcmp.eq.f32.partialorder %v607, 8.507059e+37
          %v609 = vand.u32 %v597, 2147483648
          %v610 = vor.u32 1.1754944e-38, %v609
          %v611 = vsel %vm608, %v610, %v606
          %v612 = vmul.f32 1.0, %v611
          %v613 = vld [vmem:[#allocation2] sm:$0xff]
          %615 = vset.pattern.permute.xlu0 0
          %616 = vperm.xlu0 %615, %v612
          %v617 = vpop.permute.xlu0 %616
          %v619 = vmul.f32 %v613, %v617
          %v620 = vld [vmem:[#allocation6] sm:$0xff]
          %v621 = vld [vmem:[#allocation6 + $0x8] sm:$0xff]
          %v622 = vld [vmem:[#allocation6 + $0x10] sm:$0xff]
          %v623 = vld [vmem:[#allocation6 + $0x18] sm:$0xff]
          %v624 = vld [vmem:[%s3] sm:$0x1]
          %v626 = vperm.slane %v624, 0
          %v629 = vsel %vm495, %v619, 0
          %631 = vmatpush.msra.mxu0 0.0
          %632 = vmatpush.msra.mxu0 0.0
          %633 = vmatpush.msra.mxu0 0.0
          %634 = vmatpush.msra.mxu0 0.0
          %635 = vmatpush.msra.mxu0 0.0
          %636 = vmatpush.msra.mxu0 0.0
          %637 = vmatpush.msra.mxu0 0.0
          %638 = vmatpush.msra.mxu0 0.0
          %639 = vmatpush.msra.mxu0 0.0
          %640 = vmatpush.msra.mxu0 0.0
          %641 = vmatpush.msra.mxu0 0.0
          %642 = vmatpush.msra.mxu0 0.0
          %643 = vmatpush.msra.mxu0 %v623
          %644 = vmatpush.msra.mxu0 %v622
          %645 = vmatpush.msra.mxu0 %v621
          %646 = vmatpush.msra.mxu0 %v620
          %647 = vmatmul.f32.gmra.mxu0 %v629
          %v648 = vpop.f32.mrf.mxu0
          %v649 = vadd.f32 %v626, %v648
          %650 = vdwg.mxu0
          %651 = vst.msk [vmem:[#allocation8] sm:$0xff] %vm495, %v649
        $region52: #{tpu_custom_call.1} parent=35 // pred_fallthru
          _
        // Predicated region
        $region53: #{tpu_custom_call.1} parent=35 // pred_check
          %p652 = pneg %p146
        $region54: #{tpu_custom_call.1} parent=35 // pred_check_branch
          %654 = sbr.rel (%p652) target = $region56
        $region55: #{tpu_custom_call.1} parent=35 // pred_region
          %656 = vsyncadd [#allocation5], 0
          %s657 = smul.addr %s24, 8
          %s658 = scalar_lea.hbm %s4, %s657
          %s660 = sshll.u32 [#allocation8], 4
          %s661 = int_to_ptr.vmem [resolvable:$true] %s660
          %s662 = sshll.u32 %s658, 4
          %s663 = int_to_ptr.hbm [resolvable:$true] %s662
          %665 = dma.vmem_to_hbm [thread:$0]  %s661, 128, %s663, [#allocation5]
        $region56: #{tpu_custom_call.1} parent=35 // pred_fallthru
          _
        // Predicated region
        $region57: #{tpu_custom_call.1} parent=35 // pred_check
          %p666 = pneg %p146
        $region58: #{tpu_custom_call.1} parent=35 // pred_check_branch
          %668 = sbr.rel (%p666) target = $region60
        $region59: #{tpu_custom_call.1} parent=35 // pred_region
          %670 = dma.done [#allocation5], 128
        $region60: #{tpu_custom_call.1} parent=35 // pred_fallthru
          _
      $region36: #{tpu_custom_call.1} parent=5 // pred_fallthru
        _
      %p671 = scmp.le.s32.totalorder 2, %s15
      // Predicated region
      $region61: #{tpu_custom_call.1} parent=5 // pred_check
        %p672 = pneg %p671
      $region62: #{tpu_custom_call.1} parent=5 // pred_check_branch
        %674 = sbr.rel (%p672) target = $region64
      $region63: #{tpu_custom_call.1} parent=5 // pred_region
        %s675 = ssub.s32 %s15, 2
      $region64: #{tpu_custom_call.1} parent=5 // pred_fallthru
        _
    $region6: #{tpu_custom_call.1} parent=1 // loop_footer
      %s19 = sadd.s32 1, %s15
    $region7: #{tpu_custom_call.1} parent=1 // loop_footer_branch
      %14 = sbr.rel target = $region3
    $region8: #{tpu_custom_call.1} parent=1 // loop_exit
      _
    %676 = vsyncpa [#allocation4], 1
    %s677 = scalar_lea.sflag [#allocation4], 1
    %678 = vsyncpa %s677, 1
    %679 = vsyncpa [#allocation7], 1
    %680 = vsyncpa [#allocation5], 1
    %s681 = scalar_lea.sflag [#allocation5], 1
    %682 = vsyncpa %s681, 1

</llo_original>
